<compile_context>
chip_gen: v7x
topology: tpu7x:2x2x1
jax: 0.10.0
libtpu: 0.0.40
codegen_flags: <defaults>
</compile_context>

<pallas_src>
import functools

import jax
import jax.numpy as jnp
from jax.experimental import pallas as pl
from jax.experimental.pallas import tpu as pltpu


def _tv_loss_ref(x, tv_loss_weight: float = 1.0):
    """Pure-JAX reference mirroring the PyTorch TVLoss.forward semantics."""
    n, c, h, w = x.shape
    xf = x.astype(jnp.float32)
    count_h = c * (h - 1) * w
    count_w = c * h * (w - 1)
    h_tv = jnp.sum(jnp.square(xf[:, :, 1:, :] - xf[:, :, : h - 1, :]))
    w_tv = jnp.sum(jnp.square(xf[:, :, :, 1:] - xf[:, :, :, : w - 1]))
    return tv_loss_weight * 2.0 * (h_tv / count_h + w_tv / count_w) / n


def _tv_kernel(x_ref, maskw_ref, h_acc_ref, w_acc_ref, *, w: int):
    """One grid step: reduce one lane-dense (TB, H*W) block to two partials.

    x_ref:     (TB, HW)   block of flattened image slices (caller dtype).
    maskw_ref: (1, HW-1)  f32 0/1 mask, resident (same block every step).
    h_acc_ref: (1, 1, 1)  f32 per-partition accumulator of vertical diffs.
    w_acc_ref: (1, 1, 1)  f32 per-partition accumulator of horizontal diffs.
    """
    # Zero this partition's accumulators on its first inner step only.
    @pl.when(pl.program_id(1) == 0)
    def _init():
        h_acc_ref[...] = jnp.zeros_like(h_acc_ref)
        w_acc_ref[...] = jnp.zeros_like(w_acc_ref)

    x = x_ref[...].astype(jnp.float32)          # (TB, HW), lane-dense
    hw = x.shape[-1]

    # Vertical (H) neighbour diffs == shift-by-W on the flattened axis; every
    # position k < (H-1)*W is valid, so no mask is needed.  Fully reduce to a
    # scalar and finish this accumulate before building the W-direction
    # temporaries (keeps peak f32 temporaries low for v5e's single vst slot).
    d_h = x[:, w:] - x[:, : hw - w]             # (TB, (H-1)*W)
    h_acc_ref[...] += jnp.sum(d_h * d_h)

    # Horizontal (W) neighbour diffs == shift-by-1; the precomputed 0/1 mask
    # zeroes positions whose right neighbour wraps onto the next image row.
    d_w = (x[:, 1:] - x[:, : hw - 1]) * maskw_ref[...]   # (TB, HW-1)
    w_acc_ref[...] += jnp.sum(d_w * d_w)


def _tpu_vmem_capacity_bytes() -> int:
    try:
        return int(pltpu.get_tpu_info().vmem_capacity_bytes)
    except Exception:
        return 64 * 1024 * 1024        # conservative: v7x per-core VMEM


def _num_tensorcores() -> int:
    try:
        info = pltpu.get_tpu_info()
        for name in ("num_tensorcores", "tensorcores_per_chip", "num_cores",
                     "core_count"):
            v = getattr(info, name, None)
            if isinstance(v, int) and v >= 1:
                return int(v)
    except Exception:
        pass
    return 2   # safe upper bound; a 2-way split is a no-op on 1-TC chips


def tv_loss(x, tv_loss_weight: float = 1.0, *, target_block_elems=None):
    """Total-variation loss matching PyTorch TVLoss.forward.

    x: (N, C, H, W) array (any float dtype). Returns a float32 scalar.
    target_block_elems: optional override of elements streamed per grid step
    (default derived from the TPU generation's VMEM/HBM budgets).
    """
    n, c, h, w = x.shape

    if h < 2 or w < 2:
        # count_h or count_w is 0; keep PyTorch's divide-by-zero semantics.
        return _tv_loss_ref(x, tv_loss_weight)

    nc = n * c
    hw = h * w
    itemsize = jnp.dtype(x.dtype).itemsize

    # ---- per-generation budgets -------------------------------------------
    vmem_cap = _tpu_vmem_capacity_bytes()
    big_vmem = vmem_cap >= 96 * 1024 * 1024          # v5e / v6e (128 MiB VMEM)
    vmem_limit = (64 if big_vmem else 32) * 1024 * 1024
    if target_block_elems is None:
        # ~HBM bytes streamed per grid step; dividing by itemsize keeps the
        # per-step DMA (and fixed-overhead amortisation) constant for bf16.
        hbm_bytes_per_step = (4 if big_vmem else 2) * 1024 * 1024
        target_block_elems = max(1, hbm_bytes_per_step // itemsize)

    # Rough per-element VMEM cost: double-buffered input + f32 cast + two diff
    # temporaries; keep 25% headroom under the scoped limit.
    bytes_per_elem = 2 * itemsize + 16
    max_block_elems = (vmem_limit * 3 // 4) // bytes_per_elem

    if 8 * hw > max_block_elems:
        # TODO(synk): add an H/W-tiled path (with 1-row/1-col halos) for very
        # large images instead of falling back to plain JAX.
        return _tv_loss_ref(x, tv_loss_weight)

    target_block_elems = min(int(target_block_elems), max_block_elems)

    # ---- block / grid sizing -----------------------------------------------
    # Keep the caller's dtype (bf16 halves HBM traffic); flatten H*W onto the
    # lane axis (free row-major reshape).
    x_flat = x.reshape(nc, hw)

    tb0 = max(1, min(nc, target_block_elems // hw))
    tb = max(8, (tb0 // 8) * 8)     # 2-D block: sublane dim must be 8-aligned
    num_blocks = pl.cdiv(nc, tb)

    # Split across TensorCores (v7x) only when every partition still gets a
    # deep inner pipeline; harmless no-op on single-TC v5e / v6e.
    cores = max(1, _num_tensorcores())
    num_parts = max(1, min(cores, num_blocks // 4))
    inner = pl.cdiv(num_blocks, num_parts)

    padded_nc = tb * num_parts * inner
    if padded_nc != nc:
        # All-zero pad slices contribute exactly 0 to both sums.
        x_flat = jnp.pad(x_flat, ((0, padded_nc - nc), (0, 0)))

    # Precomputed 0/1 mask for the W-direction diff: 1.0 where the right
    # neighbour on the flattened axis belongs to the same image row.
    col = jnp.arange(hw - 1, dtype=jnp.int32) % w
    mask_w = (col != (w - 1)).astype(jnp.float32).reshape(1, hw - 1)

    kernel = functools.partial(_tv_kernel, w=w)

    h_parts, w_parts = pl.pallas_call(
        kernel,
        out_shape=(
            jax.ShapeDtypeStruct((num_parts, 1, 1), jnp.float32),
            jax.ShapeDtypeStruct((num_parts, 1, 1), jnp.float32),
        ),
        grid=(num_parts, inner),
        in_specs=[
            pl.BlockSpec((tb, hw), lambda p, i: (p * inner + i, 0)),
            pl.BlockSpec((1, hw - 1), lambda p, i: (0, 0)),   # resident mask
        ],
        out_specs=(
            pl.BlockSpec((1, 1, 1), lambda p, i: (p, 0, 0)),
            pl.BlockSpec((1, 1, 1), lambda p, i: (p, 0, 0)),
        ),
        compiler_params=pltpu.CompilerParams(
            # Outer axis: shard across cores (v7x); inner axis: accumulation.
            dimension_semantics=("parallel", "arbitrary"),
            vmem_limit_bytes=vmem_limit,
        ),
    )(x_flat, mask_w)

    # Tiny final reduction + normalization in plain JAX.
    h_tv = jnp.sum(h_parts)
    w_tv = jnp.sum(w_parts)
    count_h = c * (h - 1) * w
    count_w = c * h * (w - 1)
    return (
        jnp.float32(tv_loss_weight)
        * 2.0
        * (h_tv / count_h + w_tv / count_w)
        / n
    )


if __name__ == "__main__":
    # Shape implied by the module spec: NCHW, small.
    key = jax.random.PRNGKey(0)
    x = jax.random.normal(key, (2, 4, 16, 16), dtype=jnp.float32)
    out = jax.block_until_ready(tv_loss(x, tv_loss_weight=1.0))
    ref = _tv_loss_ref(x, tv_loss_weight=1.0)
    assert jnp.allclose(out, ref, rtol=1e-5, atol=1e-5), (out, ref)

    # Multi-block accumulation + zero padding (tiny block budget forces it).
    x2 = jax.random.normal(jax.random.PRNGKey(1), (3, 5, 32, 32), jnp.float32)
    out2 = jax.block_until_ready(
        tv_loss(x2, tv_loss_weight=0.5, target_block_elems=4096)
    )
    ref2 = _tv_loss_ref(x2, tv_loss_weight=0.5)
    assert jnp.allclose(out2, ref2, rtol=1e-4, atol=1e-5), (out2, ref2)

    # Enough blocks to exercise the multi-partition "parallel" axis and the
    # bf16 (narrow-dtype) input path.
    x3 = jax.random.normal(jax.random.PRNGKey(2), (4, 16, 16, 16), jnp.bfloat16)
    out3 = jax.block_until_ready(
        tv_loss(x3, tv_loss_weight=1.0, target_block_elems=2048)
    )
    ref3 = _tv_loss_ref(x3, tv_loss_weight=1.0)
    assert jnp.allclose(out3, ref3, rtol=1e-3, atol=1e-4), (out3, ref3)

    print("KERNEL_OK")
</pallas_src>

<mosaic_0001>
module attributes {stable_mosaic.version = 11 : i64} {
  func.func @_tv_kernel(%arg0: i32, %arg1: i32, %arg2: memref<8x256xf32, #tpu.memory_space<vmem>>, %arg3: memref<1x255xf32, #tpu.memory_space<vmem>>, %arg4: memref<1x1x1xf32, #tpu.memory_space<vmem>>, %arg5: memref<1x1x1xf32, #tpu.memory_space<vmem>>) attributes {dimension_semantics = [#tpu.dimension_semantics<parallel>, #tpu.dimension_semantics<arbitrary>], iteration_bounds = array<i64: 1, 1>, scalar_prefetch = 0 : i64, scratch_operands = 0 : i64, tpu.core_type = #tpu.core_type<tc>, window_params = [{transform_indices = @transform_0, window_bounds = array<i64: 8, 256>}, {pipeline_mode = #tpu.pipeline_mode<synchronous>, transform_indices = @transform_1, window_bounds = array<i64: 1, 255>}, {transform_indices = @transform_2, window_bounds = array<i64: 1, 1, 1>}, {transform_indices = @transform_3, window_bounds = array<i64: 1, 1, 1>}]} {
    %c0_i32 = arith.constant 0 : i32
    %0 = arith.cmpi eq, %arg1, %c0_i32 : i32
    %1 = arith.extui %0 : i1 to i32
    %c0_i32_0 = arith.constant 0 : i32
    %2 = arith.cmpi ne, %1, %c0_i32_0 : i32
    scf.if %2 {
      %cst_17 = arith.constant 0.000000e+00 : f32
      %31 = vector.broadcast %cst_17 : f32 to vector<1x1x1xf32>
      %c0_18 = arith.constant 0 : index
      %c0_19 = arith.constant 0 : index
      %c0_20 = arith.constant 0 : index
      %32 = vector.load %arg4[%c0_18, %c0_19, %c0_20] : memref<1x1x1xf32, #tpu.memory_space<vmem>>, vector<1x1x1xf32>
      tpu.vector_store %arg4[%c0_18, %c0_19, %c0_20], %31 {strides = array<i32>} : memref<1x1x1xf32, #tpu.memory_space<vmem>>, vector<1x1x1xf32>,
      %cst_21 = arith.constant 0.000000e+00 : f32
      %33 = vector.broadcast %cst_21 : f32 to vector<1x1x1xf32>
      %c0_22 = arith.constant 0 : index
      %c0_23 = arith.constant 0 : index
      %c0_24 = arith.constant 0 : index
      %34 = vector.load %arg5[%c0_22, %c0_23, %c0_24] : memref<1x1x1xf32, #tpu.memory_space<vmem>>, vector<1x1x1xf32>
      tpu.vector_store %arg5[%c0_22, %c0_23, %c0_24], %33 {strides = array<i32>} : memref<1x1x1xf32, #tpu.memory_space<vmem>>, vector<1x1x1xf32>,
    } else {
    }
    %c0 = arith.constant 0 : index
    %c0_1 = arith.constant 0 : index
    %3 = vector.load %arg2[%c0, %c0_1] : memref<8x256xf32, #tpu.memory_space<vmem>>, vector<8x256xf32>
    %4 = vector.extract_strided_slice %3 {offsets = [0, 16], sizes = [8, 240], strides = [1, 1]} : vector<8x256xf32> to vector<8x240xf32>
    %5 = vector.extract_strided_slice %3 {offsets = [0, 0], sizes = [8, 240], strides = [1, 1]} : vector<8x256xf32> to vector<8x240xf32>
    %6 = arith.subf %4, %5 : vector<8x240xf32>
    %c0_2 = arith.constant 0 : index
    %c0_3 = arith.constant 0 : index
    %c0_4 = arith.constant 0 : index
    %7 = vector.load %arg4[%c0_2, %c0_3, %c0_4] : memref<1x1x1xf32, #tpu.memory_space<vmem>>, vector<1x1x1xf32>
    %8 = arith.mulf %6, %6 : vector<8x240xf32>
    %9 = vector.shape_cast %8 : vector<8x240xf32> to vector<1x8x240xf32>
    %cst = arith.constant dense<0.000000e+00> : vector<1xf32>
    %10 = vector.multi_reduction <add>, %9, %cst [1, 2] : vector<1x8x240xf32> to vector<1xf32>
    %11 = vector.shape_cast %10 : vector<1xf32> to vector<1x1x1xf32>
    %12 = vector.extract %11[0, 0, 0] : f32 from vector<1x1x1xf32>
    %13 = vector.broadcast %12 : f32 to vector<1x1x1xf32>
    %14 = arith.addf %7, %13 : vector<1x1x1xf32>
    %c0_5 = arith.constant 0 : index
    %c0_6 = arith.constant 0 : index
    %c0_7 = arith.constant 0 : index
    %15 = vector.load %arg4[%c0_5, %c0_6, %c0_7] : memref<1x1x1xf32, #tpu.memory_space<vmem>>, vector<1x1x1xf32>
    tpu.vector_store %arg4[%c0_5, %c0_6, %c0_7], %14 {strides = array<i32>} : memref<1x1x1xf32, #tpu.memory_space<vmem>>, vector<1x1x1xf32>,
    %16 = vector.extract_strided_slice %3 {offsets = [0, 1], sizes = [8, 255], strides = [1, 1]} : vector<8x256xf32> to vector<8x255xf32>
    %17 = vector.extract_strided_slice %3 {offsets = [0, 0], sizes = [8, 255], strides = [1, 1]} : vector<8x256xf32> to vector<8x255xf32>
    %18 = arith.subf %16, %17 : vector<8x255xf32>
    %c0_8 = arith.constant 0 : index
    %c0_9 = arith.constant 0 : index
    %19 = vector.load %arg3[%c0_8, %c0_9] : memref<1x255xf32, #tpu.memory_space<vmem>>, vector<1x255xf32>
    %20 = vector.broadcast %19 : vector<1x255xf32> to vector<8x255xf32>
    %21 = arith.mulf %18, %20 : vector<8x255xf32>
    %c0_10 = arith.constant 0 : index
    %c0_11 = arith.constant 0 : index
    %c0_12 = arith.constant 0 : index
    %22 = vector.load %arg5[%c0_10, %c0_11, %c0_12] : memref<1x1x1xf32, #tpu.memory_space<vmem>>, vector<1x1x1xf32>
    %23 = arith.mulf %21, %21 : vector<8x255xf32>
    %24 = vector.shape_cast %23 : vector<8x255xf32> to vector<1x8x255xf32>
    %cst_13 = arith.constant dense<0.000000e+00> : vector<1xf32>
    %25 = vector.multi_reduction <add>, %24, %cst_13 [1, 2] : vector<1x8x255xf32> to vector<1xf32>
    %26 = vector.shape_cast %25 : vector<1xf32> to vector<1x1x1xf32>
    %27 = vector.extract %26[0, 0, 0] : f32 from vector<1x1x1xf32>
    %28 = vector.broadcast %27 : f32 to vector<1x1x1xf32>
    %29 = arith.addf %22, %28 : vector<1x1x1xf32>
    %c0_14 = arith.constant 0 : index
    %c0_15 = arith.constant 0 : index
    %c0_16 = arith.constant 0 : index
    %30 = vector.load %arg5[%c0_14, %c0_15, %c0_16] : memref<1x1x1xf32, #tpu.memory_space<vmem>>, vector<1x1x1xf32>
    tpu.vector_store %arg5[%c0_14, %c0_15, %c0_16], %29 {strides = array<i32>} : memref<1x1x1xf32, #tpu.memory_space<vmem>>, vector<1x1x1xf32>,
    return
  }
  func.func @transform_0(%arg0: i32, %arg1: i32) -> (i32, i32) {
    %c1_i32 = arith.constant 1 : i32
    %0 = arith.muli %arg0, %c1_i32 : i32
    %1 = arith.addi %0, %arg1 : i32
    %c0_i32 = arith.constant 0 : i32
    %c0_i32_0 = arith.constant 0 : i32
    return %1, %c0_i32 : i32, i32
  }
  func.func @transform_1(%arg0: i32, %arg1: i32) -> (i32, i32) {
    %c0_i32 = arith.constant 0 : i32
    %c0_i32_0 = arith.constant 0 : i32
    %c0_i32_1 = arith.constant 0 : i32
    return %c0_i32, %c0_i32_0 : i32, i32
  }
  func.func @transform_2(%arg0: i32, %arg1: i32) -> (i32, i32, i32) {
    %c0_i32 = arith.constant 0 : i32
    %c0_i32_0 = arith.constant 0 : i32
    %c0_i32_1 = arith.constant 0 : i32
    return %arg0, %c0_i32, %c0_i32_0 : i32, i32, i32
  }
  func.func @transform_3(%arg0: i32, %arg1: i32) -> (i32, i32, i32) {
    %c0_i32 = arith.constant 0 : i32
    %c0_i32_0 = arith.constant 0 : i32
    %c0_i32_1 = arith.constant 0 : i32
    return %arg0, %c0_i32, %c0_i32_0 : i32, i32, i32
  }
}

</mosaic_0001>

<llo_original>
// kernel: tpu_custom_call.1
$region0: #{tpu_custom_call.1}
  #allocation0 [shape = 'u32[]', space=smem, size = 0x4, offset = 0x4, fixed_abs, tag = 'smem constant byte address 0x4 - core index']
  #allocation1 [shape = 'u32[144,128]{1,0:T(1,128)}', space=vmem, size = 0x12000, scoped, tag = 'internal scratch']
  %s0 = inlined_call_operand.hbm [shape: f32[8,256], index: 0, kind: input, shape index: {}]
  %s1 = inlined_call_operand.vmem [shape: f32[1,255], index: 1, kind: input, shape index: {}]
  %s2 = inlined_call_operand.hbm [shape: f32[1,1,1], index: 2, kind: output, shape index: {0}]
  %s3 = inlined_call_operand.hbm [shape: f32[1,1,1], index: 3, kind: output, shape index: {1}]
  %4 = xla_tuple %s2, %s3
  %s5 = sld [smem:[#allocation0]]
  $region34: #{tpu_custom_call.1} parent=0
    _
  %s7 = ssub.s32 1, %s5
  %s8 = scalar_select 0, %s7, %s5
  $region1: #{tpu_custom_call.1} parent=0
    #allocation2 [shape = 'u8[8192]{0}', space=vmem, size = 0x2000, scoped, tag = 'input window, operand 0, single buffered']
    #allocation3 [shape = 's32[1]{0}', space=sflag, size = 0x4, scoped, tag = 'scoped memory for tpu_custom_call.1']
    #allocation4 [shape = 's32[1]{0}', space=sflag, size = 0x4, scoped, tag = 'scoped memory for tpu_custom_call.1']
    #allocation5 [shape = 'u8[512]{0}', space=vmem, size = 0x400, scoped, tag = 'output window, operand 0, single buffered']
    #allocation6 [shape = 'u8[512]{0}', space=vmem, size = 0x400, scoped, tag = 'output window, operand 1, single buffered']
    #allocation7 [shape = 's32[1]{0}', space=sflag, size = 0x4, scoped, tag = 'scoped memory for tpu_custom_call.1']
    %9 = vsyncpa [#allocation3], 0
    %10 = vsyncpa [#allocation4], 0
    %11 = vsyncpa [#allocation7], 0
    // Predicated region
    $region2: #{tpu_custom_call.1} parent=1 // pred_check
      _
    $region3: #{tpu_custom_call.1} parent=1 // pred_check_branch
      %13 = sbr.rel (0) target = $region5
    $region4: #{tpu_custom_call.1} parent=1 // pred_region
      %s14 = sadd.s32 0, 0
      %s16 = ssub.s32 256, 256
      %17 = vsyncadd [#allocation3], %s16
      %s18 = smul.addr %s14, 2
      %s19 = smul.addr %s18, 128
      %s20 = scalar_lea.hbm %s0, %s19
      %s22 = sshll.u32 [#allocation2], 4
      %s23 = int_to_ptr.vmem [resolvable:$true] %s22
      %25 = dma.hbm_to_vmem [thread:$0]  %s20, 256, %s23, [#allocation3]
    $region5: #{tpu_custom_call.1} parent=1 // pred_fallthru
      _
    // Predicated region
    $region6: #{tpu_custom_call.1} parent=1 // pred_check
      _
    $region7: #{tpu_custom_call.1} parent=1 // pred_check_branch
      %27 = sbr.rel (0) target = $region9
    $region8: #{tpu_custom_call.1} parent=1 // pred_region
      _
    $region9: #{tpu_custom_call.1} parent=1 // pred_fallthru
      _
    // Predicated region
    $region10: #{tpu_custom_call.1} parent=1 // pred_check
      _
    $region11: #{tpu_custom_call.1} parent=1 // pred_check_branch
      %29 = sbr.rel (0) target = $region13
    $region12: #{tpu_custom_call.1} parent=1 // pred_region
      %30 = dma.done [#allocation3], 256
    $region13: #{tpu_custom_call.1} parent=1 // pred_fallthru
      _
    %s31 = sadd.s32 0, 0
    %p32 = scmp.eq.s32.totalorder 0, 0
    // Predicated region
    $region14: #{tpu_custom_call.1} parent=1 // pred_check
      %p33 = pneg %p32
    $region15: #{tpu_custom_call.1} parent=1 // pred_check_branch
      %35 = sbr.rel (%p33) target = $region17
    $region16: #{tpu_custom_call.1} parent=1 // pred_region
      %vm36 = vcmask 0
      %37 = vst.msk [vmem:[#allocation5] sm:$0x1] %vm36, 0.0
      %38 = vst.msk [vmem:[#allocation6] sm:$0x1] %vm36, 0.0
    $region17: #{tpu_custom_call.1} parent=1 // pred_fallthru
      _
    %v39 = vld [vmem:[#allocation2] sm:$0xff]
    %v40 = vld [vmem:[#allocation2 + $0x8] sm:$0xff]
    %43 = vrot.lane.b32.xlu0 %v39, 16
    %v44 = vpop.permute.xlu0 %43
    %45 = vrot.lane.b32.xlu0 %v40, 16
    %v46 = vpop.permute.xlu0 %45
    %vm47 = vcmask 130048
    %v48 = vsel %vm47, %v44, %v46
    %v51 = vsub.f32 %v39, %v44
    %v52 = vsub.f32 %v40, %v48
    %v53 = vld [vmem:[#allocation5] sm:$0x1]
    %v54 = vmul.f32 %v51, %v51
    %v55 = vmul.f32 %v52, %v52
    %58 = vrot.lane.b32.xlu0 %v54, 112
    %v59 = vpop.permute.xlu0 %58
    %60 = vrot.lane.b32.xlu0 %v55, 112
    %v61 = vpop.permute.xlu0 %60
    %vm62 = vcmask 916480
    %v63 = vsel %vm62, %v59, %v61
    %v66 = vsel %vm62, %v61, 0.0
    %v67 = vadd.f32 %v63, %v66
    %68 = vadd.xlane.f32.xlu0 %v67
    %v69 = vpop.xlane.xlu0 %68
    %v70 = vrot.slane %v69, 4
    %v71 = vadd.f32 %v69, %v70
    %v72 = vrot.slane %v71, 2
    %v73 = vadd.f32 %v71, %v72
    %v74 = vrot.slane %v73, 1
    %v75 = vadd.f32 %v73, %v74
    %s76 = vtos %v75
    %v77 = vstv %s76
    %v78 = vadd.f32 %v53, %v77
    %vm79 = vcmask 0
    %80 = vst.msk [vmem:[#allocation5] sm:$0x1] %vm79, %v78
    %81 = vrot.lane.b32.xlu0 %v39, 1
    %v82 = vpop.permute.xlu0 %81
    %83 = vrot.lane.b32.xlu0 %v40, 1
    %v84 = vpop.permute.xlu0 %83
    %vm85 = vcmask 7168
    %v86 = vsel %vm85, %v82, %v84
    %v89 = vsub.f32 %v39, %v82
    %v90 = vsub.f32 %v40, %v86
    %v91 = vld [vmem:[%s1] sm:$0x3]
    %v93 = vlaneseq
    %v94 = vshrl.u32 %v93, 7
    %v95 = vsub.s32 0, %v94
    %v96 = vrot.slane %v91, %v95
    %v97 = vlaneseq
    %v98 = vshrl.u32 %v97, 7
    %v99 = vsub.s32 1, %v98
    %v100 = vrot.slane %v91, %v99
    %101 = vrot.lane.b32.xlu0 %v96, 1
    %v102 = vpop.permute.xlu0 %101
    %103 = vrot.lane.b32.xlu0 %v100, 1
    %v104 = vpop.permute.xlu0 %103
    %v105 = vsel %vm85, %v102, %v104
    %v108 = vmul.f32 %v89, %v102
    %v109 = vmul.f32 %v90, %v105
    %v110 = vld [vmem:[#allocation6] sm:$0x1]
    %v111 = vmul.f32 %v108, %v108
    %v112 = vmul.f32 %v109, %v109
    %115 = vrot.lane.b32.xlu0 %v111, 127
    %v116 = vpop.permute.xlu0 %115
    %117 = vrot.lane.b32.xlu0 %v112, 127
    %v118 = vpop.permute.xlu0 %117
    %vm119 = vcmask 1039360
    %v120 = vsel %vm119, %v116, %v118
    %v123 = vsel %vm119, %v118, 0.0
    %v124 = vadd.f32 %v120, %v123
    %125 = vadd.xlane.f32.xlu0 %v124
    %v126 = vpop.xlane.xlu0 %125
    %v127 = vrot.slane %v126, 4
    %v128 = vadd.f32 %v126, %v127
    %v129 = vrot.slane %v128, 2
    %v130 = vadd.f32 %v128, %v129
    %v131 = vrot.slane %v130, 1
    %v132 = vadd.f32 %v130, %v131
    %s133 = vtos %v132
    %v134 = vstv %s133
    %v135 = vadd.f32 %v110, %v134
    %136 = vst.msk [vmem:[#allocation6] sm:$0x1] %vm79, %v135
    // Predicated region
    $region18: #{tpu_custom_call.1} parent=1 // pred_check
      _
    $region19: #{tpu_custom_call.1} parent=1 // pred_check_branch
      %138 = sbr.rel (0) target = $region21
    $region20: #{tpu_custom_call.1} parent=1 // pred_region
      %s140 = ssub.s32 16, 16
      %141 = vsyncadd [#allocation4], %s140
      %s143 = sshll.u32 [#allocation5], 4
      %s144 = int_to_ptr.vmem [resolvable:$true] %s143
      %146 = dma.vmem_to_hbm [thread:$0]  %s144, 16, %s2, [#allocation4]
    $region21: #{tpu_custom_call.1} parent=1 // pred_fallthru
      _
    // Predicated region
    $region22: #{tpu_custom_call.1} parent=1 // pred_check
      _
    $region23: #{tpu_custom_call.1} parent=1 // pred_check_branch
      %148 = sbr.rel (0) target = $region25
    $region24: #{tpu_custom_call.1} parent=1 // pred_region
      %s150 = ssub.s32 16, 16
      %151 = vsyncadd [#allocation7], %s150
      %s153 = sshll.u32 [#allocation6], 4
      %s154 = int_to_ptr.vmem [resolvable:$true] %s153
      %156 = dma.vmem_to_hbm [thread:$0]  %s154, 16, %s3, [#allocation7]
    $region25: #{tpu_custom_call.1} parent=1 // pred_fallthru
      _
    // Predicated region
    $region26: #{tpu_custom_call.1} parent=1 // pred_check
      _
    $region27: #{tpu_custom_call.1} parent=1 // pred_check_branch
      %158 = sbr.rel (0) target = $region29
    $region28: #{tpu_custom_call.1} parent=1 // pred_region
      %159 = dma.done [#allocation4], 16
    $region29: #{tpu_custom_call.1} parent=1 // pred_fallthru
      _
    // Predicated region
    $region30: #{tpu_custom_call.1} parent=1 // pred_check
      _
    $region31: #{tpu_custom_call.1} parent=1 // pred_check_branch
      %161 = sbr.rel (0) target = $region33
    $region32: #{tpu_custom_call.1} parent=1 // pred_region
      %162 = dma.done [#allocation7], 16
    $region33: #{tpu_custom_call.1} parent=1 // pred_fallthru
      _
    %163 = vsyncpa [#allocation3], 1
    %164 = vsyncpa [#allocation4], 1
    %165 = vsyncpa [#allocation7], 1

</llo_original>
